<compile_context>
chip_gen: v5e
topology: v5e:2x2
jax: 0.10.0
libtpu: 0.0.40
codegen_flags: <defaults>
</compile_context>

<pallas_src>
import jax
import jax.numpy as jnp
import numpy as np
from jax.experimental import pallas as pl
from jax.experimental.pallas import tpu as pltpu

_LANE = 128
_SUBLANE = 8


def _round_up(x, m):
    return (x + m - 1) // m * m


def _vmem_capacity_bytes():
    """Per-generation VMEM capacity; conservative 64 MiB (v7x per-TC) fallback."""
    try:
        cap = int(pltpu.get_tpu_info().vmem_capacity_bytes)
        if cap > 0:
            return cap
    except Exception:
        pass
    return 64 << 20


def _vmem_limit_bytes():
    cap = _vmem_capacity_bytes()
    return int(min(cap * 3 // 4, 96 << 20))


def _mlp_kernel(x_ref, w1_ref, b1_ref, w2_ref, b2_ref, o_ref):
    # Linear 1 on the MXU with f32 accumulation; bias-add + ReLU in f32
    # (v5e VPU has no bf16 ALU).
    h = jnp.dot(x_ref[...], w1_ref[...], preferred_element_type=jnp.float32)
    h = jnp.maximum(h + b1_ref[...], 0.0)
    # Linear 2: feed hidden activations to the MXU in the weight dtype
    # (bf16 on v6e/v7x for peak throughput), accumulate f32, bias+ReLU f32,
    # single cast on store.
    y = jnp.dot(h.astype(w2_ref.dtype), w2_ref[...],
                preferred_element_type=jnp.float32)
    y = jnp.maximum(y + b2_ref[...], 0.0)
    o_ref[...] = y.astype(o_ref.dtype)


def _choose_tile_n(n, c_in, hidden, c_out, act_bytes, out_bytes):
    """Row tile (rows per grid step) from the per-generation VMEM budget.

    VMEM footprints use lane/sublane-padded dims (that's how blocks live in VMEM)
    even though HBM traffic stays unpadded.
    """
    c_in_v = _round_up(c_in, _LANE)
    h_v = _round_up(hidden, _LANE)
    c_out_v = _round_up(c_out, _LANE)

    weight_vmem = ((_round_up(c_in, _SUBLANE) * h_v
                    + _round_up(hidden, _SUBLANE) * c_out_v) * act_bytes
                   + (h_v + c_out_v) * 4)
    per_row = (2 * c_in_v * act_bytes        # double-buffered x tile
               + 2 * c_out_v * out_bytes     # double-buffered out tile
               + h_v * (4 + act_bytes)       # f32 hidden tile + its cast copy
               + c_out_v * 4)                # f32 pre-cast output tile

    budget = max(int(_vmem_capacity_bytes() * 0.6) - weight_vmem, 4 << 20)
    tile = budget // per_row

    if n <= _SUBLANE:
        return n                              # single block == full array dim
    n8 = _round_up(n, _SUBLANE)
    if tile >= n8:
        return n                              # whole problem in one grid step
    # Multi-step: MXU/DMA-friendly tiles, multiples of 256 (>= 512 typically).
    tile = max(256, (tile // 256) * 256)
    return int(min(tile, n8 - _SUBLANE))


def mlp_encoder(x, w1, b1, w2, b2, *, tile_n=None, compute_dtype=None):
    """Fused ReLU(ReLU(x @ w1 + b1) @ w2 + b2).

    x: [N, C_in]; w1: [C_in, H]; b1: [H]; w2: [H, C_out]; b2: [C_out].
    (Weights stored transposed vs. nn.Linear, i.e. [in, out].)
    """
    N, C_in = x.shape
    H = w1.shape[1]
    C_out = w2.shape[1]
    if compute_dtype is None:
        compute_dtype = x.dtype
    out_dtype = x.dtype

    act_bytes = np.dtype(compute_dtype).itemsize
    out_bytes = np.dtype(out_dtype).itemsize

    if tile_n is None:
        tile_n = _choose_tile_n(N, C_in, H, C_out, act_bytes, out_bytes)
    tile_n = int(tile_n)
    if tile_n >= N:
        tile_n = N                    # block dim == full array dim: always legal
    else:
        tile_n = max(_SUBLANE, (tile_n // _SUBLANE) * _SUBLANE)
    grid = (pl.cdiv(N, tile_n),)      # ragged last block handled by Pallas masking

    # No HBM padding: only (no-op when dtypes already match) casts + bias reshape.
    xc = x.astype(compute_dtype)
    w1c = w1.astype(compute_dtype)
    w2c = w2.astype(compute_dtype)
    b1c = b1.astype(jnp.float32).reshape(1, H)
    b2c = b2.astype(jnp.float32).reshape(1, C_out)

    # Honest cost: exactly the bytes the kernel streams (no padding anywhere).
    cost = pl.CostEstimate(
        flops=2 * N * (C_in * H + H * C_out),
        transcendentals=0,
        bytes_accessed=(N * C_in * act_bytes
                        + (C_in * H + H * C_out) * act_bytes
                        + (H + C_out) * 4
                        + N * C_out * out_bytes),
    )

    def build(weight_pipeline_mode):
        wkw = ({} if weight_pipeline_mode is None
               else {"pipeline_mode": weight_pipeline_mode})
        return pl.pallas_call(
            _mlp_kernel,
            out_shape=jax.ShapeDtypeStruct((N, C_out), out_dtype),
            grid_spec=pltpu.PrefetchScalarGridSpec(
                num_scalar_prefetch=0,
                grid=grid,
                in_specs=[
                    pl.BlockSpec((tile_n, C_in), lambda i: (i, 0)),        # x row-tile
                    pl.BlockSpec((C_in, H), lambda i: (0, 0), **wkw),      # W1 (resident)
                    pl.BlockSpec((1, H), lambda i: (0, 0), **wkw),         # b1
                    pl.BlockSpec((H, C_out), lambda i: (0, 0), **wkw),     # W2 (resident)
                    pl.BlockSpec((1, C_out), lambda i: (0, 0), **wkw),     # b2
                ],
                out_specs=pl.BlockSpec((tile_n, C_out), lambda i: (i, 0)),
            ),
            compiler_params=pltpu.CompilerParams(
                dimension_semantics=("parallel",),
                vmem_limit_bytes=_vmem_limit_bytes(),
            ),
            cost_estimate=cost,
        )

    try:
        # Grid-invariant weights/biases: single-buffered (halves their VMEM footprint).
        return build(pl.Buffered(1))(xc, w1c, b1c, w2c, b2c)
    except pltpu.LoweringException:
        # Narrow fallback only for lowering issues with single-buffering.
        return build(None)(xc, w1c, b1c, w2c, b2c)


def _init_linear(key, fan_in, fan_out, dtype=jnp.float32):
    # Deterministic PyTorch-style init: U(-1/sqrt(fan_in), 1/sqrt(fan_in))
    kw, kb = jax.random.split(key)
    bound = 1.0 / jnp.sqrt(fan_in)
    w = jax.random.uniform(kw, (fan_in, fan_out), dtype, -bound, bound)
    b = jax.random.uniform(kb, (fan_out,), dtype, -bound, bound)
    return w, b


def _ref(x, w1, b1, w2, b2):
    return jnp.maximum(jnp.maximum(x @ w1 + b1, 0.0) @ w2 + b2, 0.0)


if __name__ == "__main__":
    key = jax.random.PRNGKey(0)
    k_x, k_x2, k_l1, k_l2 = jax.random.split(key, 4)

    # Module hyper-params (MLPEncoder(in, hidden, out))
    in_channels, hidden_channels, out_channels = 4, 32, 16

    w1, b1 = _init_linear(k_l1, in_channels, hidden_channels)
    w2, b2 = _init_linear(k_l2, hidden_channels, out_channels)

    # --- small f32 case (tight check vs. the PyTorch-equivalent reference) ---
    N = 8
    x = jax.random.normal(k_x, (N, in_channels), jnp.float32)
    out = mlp_encoder(x, w1, b1, w2, b2)
    jax.block_until_ready(out)
    ref = _ref(x, w1, b1, w2, b2)
    assert out.shape == (N, out_channels)
    assert jnp.allclose(out, ref, atol=1e-5, rtol=1e-5)

    # --- larger, non-divisible N exercises the multi-step ragged-grid path ---
    N2 = 1000
    x2 = jax.random.normal(k_x2, (N2, in_channels), jnp.float32)
    out2 = mlp_encoder(x2, w1, b1, w2, b2, tile_n=256)   # 4 steps, masked last block
    jax.block_until_ready(out2)
    ref2 = _ref(x2, w1, b1, w2, b2)
    assert out2.shape == (N2, out_channels)
    assert jnp.allclose(out2, ref2, atol=1e-5, rtol=1e-5)

    # --- auto tile selection (whole problem in one grid step at these shapes) ---
    out3 = mlp_encoder(x2, w1, b1, w2, b2)
    jax.block_until_ready(out3)
    assert jnp.allclose(out3, ref2, atol=1e-5, rtol=1e-5)

    # --- bf16 weights/activations (MXU-friendly on v6e/v7x), f32 accumulation ---
    out_bf16 = mlp_encoder(x2.astype(jnp.bfloat16),
                           w1.astype(jnp.bfloat16), b1,
                           w2.astype(jnp.bfloat16), b2, tile_n=512)
    jax.block_until_ready(out_bf16)
    assert out_bf16.dtype == jnp.bfloat16
    assert jnp.allclose(out_bf16.astype(jnp.float32), ref2, atol=1e-1, rtol=1e-1)

    print("KERNEL_OK")
</pallas_src>

<mosaic_0001>
module attributes {stable_mosaic.version = 11 : i64} {
  func.func @_mlp_kernel(%arg0: i32, %arg1: memref<8x4xf32, #tpu.memory_space<vmem>>, %arg2: memref<4x32xf32, #tpu.memory_space<vmem>>, %arg3: memref<1x32xf32, #tpu.memory_space<vmem>>, %arg4: memref<32x16xf32, #tpu.memory_space<vmem>>, %arg5: memref<1x16xf32, #tpu.memory_space<vmem>>, %arg6: memref<8x16xf32, #tpu.memory_space<vmem>>) attributes {dimension_semantics = [#tpu.dimension_semantics<parallel>], iteration_bounds = array<i64: 1>, scalar_prefetch = 0 : i64, scratch_operands = 0 : i64, tpu.core_type = #tpu.core_type<tc>, window_params = [{transform_indices = @transform_0, window_bounds = array<i64: 8, 4>}, {pipeline_mode = #tpu.pipeline_mode<synchronous>, transform_indices = @transform_1, window_bounds = array<i64: 4, 32>}, {pipeline_mode = #tpu.pipeline_mode<synchronous>, transform_indices = @transform_2, window_bounds = array<i64: 1, 32>}, {pipeline_mode = #tpu.pipeline_mode<synchronous>, transform_indices = @transform_3, window_bounds = array<i64: 32, 16>}, {pipeline_mode = #tpu.pipeline_mode<synchronous>, transform_indices = @transform_4, window_bounds = array<i64: 1, 16>}, {transform_indices = @transform_5, window_bounds = array<i64: 8, 16>}]} {
    %c0 = arith.constant 0 : index
    %c0_0 = arith.constant 0 : index
    %0 = vector.load %arg1[%c0, %c0_0] : memref<8x4xf32, #tpu.memory_space<vmem>>, vector<8x4xf32>
    %c0_1 = arith.constant 0 : index
    %c0_2 = arith.constant 0 : index
    %1 = vector.load %arg2[%c0_1, %c0_2] : memref<4x32xf32, #tpu.memory_space<vmem>>, vector<4x32xf32>
    %cst = arith.constant dense<0.000000e+00> : vector<8x32xf32>
    %2 = tpu.matmul %0, %1, %cst {dimension_numbers = #tpu.dot_dimension_numbers<[1], [0], [0], [1], [0, 0, 1, 1], [], []>} : vector<8x4xf32>, vector<4x32xf32>, vector<8x32xf32> -> vector<8x32xf32>
    %c0_3 = arith.constant 0 : index
    %c0_4 = arith.constant 0 : index
    %3 = vector.load %arg3[%c0_3, %c0_4] : memref<1x32xf32, #tpu.memory_space<vmem>>, vector<1x32xf32>
    %4 = vector.broadcast %3 : vector<1x32xf32> to vector<8x32xf32>
    %5 = arith.addf %2, %4 : vector<8x32xf32>
    %cst_5 = arith.constant 0.000000e+00 : f32
    %6 = vector.broadcast %cst_5 : f32 to vector<8x32xf32>
    %7 = arith.maximumf %5, %6 : vector<8x32xf32>
    %c0_6 = arith.constant 0 : index
    %c0_7 = arith.constant 0 : index
    %8 = vector.load %arg4[%c0_6, %c0_7] : memref<32x16xf32, #tpu.memory_space<vmem>>, vector<32x16xf32>
    %cst_8 = arith.constant dense<0.000000e+00> : vector<8x16xf32>
    %9 = tpu.matmul %7, %8, %cst_8 {dimension_numbers = #tpu.dot_dimension_numbers<[1], [0], [0], [1], [0, 0, 1, 1], [], []>} : vector<8x32xf32>, vector<32x16xf32>, vector<8x16xf32> -> vector<8x16xf32>
    %c0_9 = arith.constant 0 : index
    %c0_10 = arith.constant 0 : index
    %10 = vector.load %arg5[%c0_9, %c0_10] : memref<1x16xf32, #tpu.memory_space<vmem>>, vector<1x16xf32>
    %11 = vector.broadcast %10 : vector<1x16xf32> to vector<8x16xf32>
    %12 = arith.addf %9, %11 : vector<8x16xf32>
    %cst_11 = arith.constant 0.000000e+00 : f32
    %13 = vector.broadcast %cst_11 : f32 to vector<8x16xf32>
    %14 = arith.maximumf %12, %13 : vector<8x16xf32>
    %c0_12 = arith.constant 0 : index
    %c0_13 = arith.constant 0 : index
    %15 = vector.load %arg6[%c0_12, %c0_13] : memref<8x16xf32, #tpu.memory_space<vmem>>, vector<8x16xf32>
    tpu.vector_store %arg6[%c0_12, %c0_13], %14 {strides = array<i32>} : memref<8x16xf32, #tpu.memory_space<vmem>>, vector<8x16xf32>,
    return
  }
  func.func @transform_0(%arg0: i32) -> (i32, i32) {
    %c0_i32 = arith.constant 0 : i32
    %c0_i32_0 = arith.constant 0 : i32
    return %arg0, %c0_i32 : i32, i32
  }
  func.func @transform_1(%arg0: i32) -> (i32, i32) {
    %c0_i32 = arith.constant 0 : i32
    %c0_i32_0 = arith.constant 0 : i32
    %c0_i32_1 = arith.constant 0 : i32
    return %c0_i32, %c0_i32_0 : i32, i32
  }
  func.func @transform_2(%arg0: i32) -> (i32, i32) {
    %c0_i32 = arith.constant 0 : i32
    %c0_i32_0 = arith.constant 0 : i32
    %c0_i32_1 = arith.constant 0 : i32
    return %c0_i32, %c0_i32_0 : i32, i32
  }
  func.func @transform_3(%arg0: i32) -> (i32, i32) {
    %c0_i32 = arith.constant 0 : i32
    %c0_i32_0 = arith.constant 0 : i32
    %c0_i32_1 = arith.constant 0 : i32
    return %c0_i32, %c0_i32_0 : i32, i32
  }
  func.func @transform_4(%arg0: i32) -> (i32, i32) {
    %c0_i32 = arith.constant 0 : i32
    %c0_i32_0 = arith.constant 0 : i32
    %c0_i32_1 = arith.constant 0 : i32
    return %c0_i32, %c0_i32_0 : i32, i32
  }
  func.func @transform_5(%arg0: i32) -> (i32, i32) {
    %c0_i32 = arith.constant 0 : i32
    %c0_i32_0 = arith.constant 0 : i32
    return %arg0, %c0_i32 : i32, i32
  }
}

</mosaic_0001>

<llo_original>
// kernel: tpu_custom_call.1
$region0: #{tpu_custom_call.1}
  #allocation0 [shape = 'u32[]', space=smem, size = 0x4, offset = 0x4, fixed_abs, tag = 'smem constant byte address 0x4 - core index']
  #allocation1 [shape = 'u32[72,128]{1,0:T(1,128)}', space=vmem, size = 0x9000, scoped, tag = 'internal scratch']
  %s0 = inlined_call_operand.vmem [shape: f32[8,4], index: 0, kind: input, shape index: {}]
  %s1 = inlined_call_operand.vmem [shape: f32[4,32], index: 1, kind: input, shape index: {}]
  %s2 = inlined_call_operand.vmem [shape: f32[1,32], index: 2, kind: input, shape index: {}]
  %s3 = inlined_call_operand.vmem [shape: f32[32,16], index: 3, kind: input, shape index: {}]
  %s4 = inlined_call_operand.vmem [shape: f32[1,16], index: 4, kind: input, shape index: {}]
  %s5 = inlined_call_operand.hbm [shape: f32[8,16], index: 5, kind: output, shape index: {}]
  %s6 = sld [smem:[#allocation0]]
  $region30: #{tpu_custom_call.1} parent=0
    _
  %s8 = ssub.s32 1, %s6
  %s9 = scalar_select 0, %s8, %s6
  $region1: #{tpu_custom_call.1} parent=0
    #allocation2 [shape = 'u8[4096]{0}', space=vmem, size = 0x1000, scoped, tag = 'output window, operand 0, single buffered']
    #allocation3 [shape = 's32[1]{0}', space=sflag, size = 0x4, scoped, tag = 'scoped memory for tpu_custom_call.1']
    %10 = vsyncpa [#allocation3], 0
    // Predicated region
    $region2: #{tpu_custom_call.1} parent=1 // pred_check
      _
    $region3: #{tpu_custom_call.1} parent=1 // pred_check_branch
      %12 = sbr.rel (0) target = $region5
    $region4: #{tpu_custom_call.1} parent=1 // pred_region
      _
    $region5: #{tpu_custom_call.1} parent=1 // pred_fallthru
      _
    // Predicated region
    $region6: #{tpu_custom_call.1} parent=1 // pred_check
      _
    $region7: #{tpu_custom_call.1} parent=1 // pred_check_branch
      %14 = sbr.rel (0) target = $region9
    $region8: #{tpu_custom_call.1} parent=1 // pred_region
      _
    $region9: #{tpu_custom_call.1} parent=1 // pred_fallthru
      _
    // Predicated region
    $region10: #{tpu_custom_call.1} parent=1 // pred_check
      _
    $region11: #{tpu_custom_call.1} parent=1 // pred_check_branch
      %16 = sbr.rel (0) target = $region13
    $region12: #{tpu_custom_call.1} parent=1 // pred_region
      _
    $region13: #{tpu_custom_call.1} parent=1 // pred_fallthru
      _
    // Predicated region
    $region14: #{tpu_custom_call.1} parent=1 // pred_check
      _
    $region15: #{tpu_custom_call.1} parent=1 // pred_check_branch
      %18 = sbr.rel (0) target = $region17
    $region16: #{tpu_custom_call.1} parent=1 // pred_region
      _
    $region17: #{tpu_custom_call.1} parent=1 // pred_fallthru
      _
    // Predicated region
    $region18: #{tpu_custom_call.1} parent=1 // pred_check
      _
    $region19: #{tpu_custom_call.1} parent=1 // pred_check_branch
      %20 = sbr.rel (0) target = $region21
    $region20: #{tpu_custom_call.1} parent=1 // pred_region
      _
    $region21: #{tpu_custom_call.1} parent=1 // pred_fallthru
      _
    %v21 = vld [vmem:[%s0] sm:$0xff]
    %v22 = vld [vmem:[%s1] sm:$0xf]
    %v23 = vld [vmem:[%s2] sm:$0x1]
    %v25 = vperm.slane %v23, 0
    %vm27 = vcmask 31744
    %v29 = vsel %vm27, %v21, 0
    %vm31 = vcmask 1043456
    %v33 = vsel %vm31, %v22, 0
    %35 = vmatpush.msra.mxu0 0.0
    %36 = vmatpush.msra.mxu0 0.0
    %37 = vmatpush.msra.mxu0 0.0
    %38 = vmatpush.msra.mxu0 0.0
    %39 = vmatpush.msra.mxu0 0.0
    %40 = vmatpush.msra.mxu0 0.0
    %41 = vmatpush.msra.mxu0 0.0
    %42 = vmatpush.msra.mxu0 0.0
    %43 = vmatpush.msra.mxu0 0.0
    %44 = vmatpush.msra.mxu0 0.0
    %45 = vmatpush.msra.mxu0 0.0
    %46 = vmatpush.msra.mxu0 0.0
    %47 = vmatpush.msra.mxu0 0.0
    %48 = vmatpush.msra.mxu0 0.0
    %49 = vmatpush.msra.mxu0 0.0
    %50 = vmatpush.msra.mxu0 %v33
    %51 = vmatmul.f32.gmra.mxu0 %v29
    %v52 = vpop.f32.mrf.mxu0
    %v53 = vadd.f32 %v25, %v52
    %54 = vdwg.mxu0
    %v55 = vmax.f32 %v53, 0.0
    %v56 = vld [vmem:[%s3] sm:$0xff]
    %v57 = vld [vmem:[%s3 + $0x8] sm:$0xff]
    %v58 = vld [vmem:[%s3 + $0x10] sm:$0xff]
    %v59 = vld [vmem:[%s3 + $0x18] sm:$0xff]
    %v60 = vld [vmem:[%s4] sm:$0x1]
    %v62 = vperm.slane %v60, 0
    %vm64 = vcmask 261120
    %v66 = vsel %vm64, %v55, 0
    %68 = vmatpush.msra.mxu0 0.0
    %69 = vmatpush.msra.mxu0 0.0
    %70 = vmatpush.msra.mxu0 0.0
    %71 = vmatpush.msra.mxu0 0.0
    %72 = vmatpush.msra.mxu0 0.0
    %73 = vmatpush.msra.mxu0 0.0
    %74 = vmatpush.msra.mxu0 0.0
    %75 = vmatpush.msra.mxu0 0.0
    %76 = vmatpush.msra.mxu0 0.0
    %77 = vmatpush.msra.mxu0 0.0
    %78 = vmatpush.msra.mxu0 0.0
    %79 = vmatpush.msra.mxu0 0.0
    %80 = vmatpush.msra.mxu0 %v59
    %81 = vmatpush.msra.mxu0 %v58
    %82 = vmatpush.msra.mxu0 %v57
    %83 = vmatpush.msra.mxu0 %v56
    %84 = vmatmul.f32.gmra.mxu0 %v66
    %v85 = vpop.f32.mrf.mxu0
    %v86 = vadd.f32 %v62, %v85
    %87 = vdwg.mxu0
    %v88 = vmax.f32 %v86, 0.0
    %vm89 = vcmask 130048
    %90 = vst.msk [vmem:[#allocation2] sm:$0xff] %vm89, %v88
    // Predicated region
    $region22: #{tpu_custom_call.1} parent=1 // pred_check
      _
    $region23: #{tpu_custom_call.1} parent=1 // pred_check_branch
      %92 = sbr.rel (0) target = $region25
    $region24: #{tpu_custom_call.1} parent=1 // pred_region
      %94 = vsyncadd [#allocation3], 0
      %s96 = sshll.u32 [#allocation2], 4
      %s97 = int_to_ptr.vmem [resolvable:$true] %s96
      %s98 = sshll.u32 %s5, 4
      %s99 = int_to_ptr.hbm [resolvable:$true] %s98
      %101 = dma.vmem_to_hbm [thread:$0]  %s97, 128, %s99, [#allocation3]
    $region25: #{tpu_custom_call.1} parent=1 // pred_fallthru
      _
    // Predicated region
    $region26: #{tpu_custom_call.1} parent=1 // pred_check
      _
    $region27: #{tpu_custom_call.1} parent=1 // pred_check_branch
      %103 = sbr.rel (0) target = $region29
    $region28: #{tpu_custom_call.1} parent=1 // pred_region
      %105 = dma.done [#allocation3], 128
    $region29: #{tpu_custom_call.1} parent=1 // pred_fallthru
      _
    %106 = vsyncpa [#allocation3], 1

</llo_original>
